<compile_context>
chip_gen: v7x
topology: tpu7x:2x2x1
jax: 0.10.0
libtpu: 0.0.40
codegen_flags: <defaults>
</compile_context>

<pallas_src>
import functools

import jax
import jax.numpy as jnp
from jax.experimental import pallas as pl
from jax.experimental.pallas import tpu as pltpu


_HIDDEN1 = 256
_HIDDEN2 = 64        # PyTorch bottleneck width
_HIDDEN2_PAD = 128   # padded to a full lane group (lane-dense intermediates)


def _round_up(x, m):
    return (x + m - 1) // m * m


@functools.lru_cache(maxsize=None)
def _vmem_limits():
    """Generation-aware (budget, limit) in bytes for tiling / CompilerParams."""
    cap = 64 * 1024 * 1024          # conservative fallback (v7x per-core VMEM)
    try:
        cap = int(pltpu.get_tpu_info().vmem_capacity_bytes)
    except Exception:
        pass
    limit = min((3 * cap) // 4, 100 * 1024 * 1024)   # v7x ~48 MiB, v5e/v6e ~96 MiB
    budget = limit // 2                              # headroom for compiler scratch
    return budget, limit


def dae_kernel(x_ref,
               w1_ref, b1_ref,
               w2_ref, b2_ref,
               w3_ref, b3_ref,
               w4_ref, b4_ref,
               out_ref):
    """Fused 4-layer MLP (autoencoder) for one batch tile; weights resident in VMEM."""
    cdt = w1_ref.dtype
    x = x_ref[...]
    if x.dtype != cdt:
        x = x.astype(cdt)   # feed the MXU in the weight dtype (bf16 by default)

    # encoder: Linear(D, 256) + ReLU            (Dropout = identity in eval mode)
    h = jnp.dot(x, w1_ref[...], preferred_element_type=jnp.float32) + b1_ref[...]
    h = jnp.maximum(h, 0.0).astype(cdt)

    # encoder: Linear(256, 64 -> 128 pad) + ReLU (padded lanes stay exactly 0)
    h = jnp.dot(h, w2_ref[...], preferred_element_type=jnp.float32) + b2_ref[...]
    h = jnp.maximum(h, 0.0).astype(cdt)

    # decoder: Linear(64 -> 128 pad, 256) + ReLU
    h = jnp.dot(h, w3_ref[...], preferred_element_type=jnp.float32) + b3_ref[...]
    h = jnp.maximum(h, 0.0).astype(cdt)

    # decoder: Linear(256, D)  (no activation)
    y = jnp.dot(h, w4_ref[...], preferred_element_type=jnp.float32) + b4_ref[...]
    out_ref[...] = y.astype(out_ref.dtype)


def prepare_params(params, compute_dtype=jnp.bfloat16):
    """One-time weight prep, hoisted out of the per-call forward path.

    Casts the matmul operands to compute_dtype (bf16 default) and zero-pads the
    64-wide bottleneck to 128 lanes.  Biases stay f32 and are added to the f32
    accumulator inside the kernel.  Call once; reuse across forward calls.
    """
    pad = _HIDDEN2_PAD - _HIDDEN2
    return {
        "w1": params["w1"].astype(compute_dtype),                               # (D, 256)
        "b1": params["b1"].astype(jnp.float32),                                 # (1, 256)
        "w2": jnp.pad(params["w2"], ((0, 0), (0, pad))).astype(compute_dtype),  # (256, 128)
        "b2": jnp.pad(params["b2"], ((0, 0), (0, pad))).astype(jnp.float32),    # (1, 128)
        "w3": jnp.pad(params["w3"], ((0, pad), (0, 0))).astype(compute_dtype),  # (128, 256)
        "b3": params["b3"].astype(jnp.float32),                                 # (1, 256)
        "w4": params["w4"].astype(compute_dtype),                               # (256, D)
        "b4": params["b4"].astype(jnp.float32),                                 # (1, D)
    }


def _pick_batch_tile(requested, B, D, x_bytes, w_bytes, vmem_budget):
    """Batch tile (multiple of 8, or the full batch when B <= 8) that keeps the
    grid at >= 4 steps when the batch allows it (>= 2 per TensorCore on megacore
    parts) and fits the VMEM budget."""
    if B <= 8:
        return B
    bt = min(_round_up(requested, 8), _round_up(B, 8))

    def vmem_estimate(tile):
        acts = 2 * 2 * tile * D * x_bytes                            # x + out, double-buffered
        wts = 2 * w_bytes * (D * _HIDDEN1 + _HIDDEN1 * _HIDDEN2_PAD
                             + _HIDDEN2_PAD * _HIDDEN1 + _HIDDEN1 * D)  # weights, double-buffered
        tmps = 4 * tile * (2 * _HIDDEN1 + _HIDDEN2_PAD + D)          # f32 intermediates
        return acts + wts + tmps

    target_steps = min(4, max(1, B // 8))
    while bt > 8 and (pl.cdiv(B, bt) < target_steps
                      or vmem_estimate(bt) > vmem_budget):
        bt = max(8, _round_up(bt // 2, 8))
    return bt


@functools.partial(jax.jit, static_argnames=("batch_tile",))
def dae_forward(x, prepared, batch_tile=1024):
    """x: (B, D).  prepared: output of prepare_params() (weights (in,out), biases (1,out))."""
    B, D = x.shape
    w1, b1 = prepared["w1"], prepared["b1"]
    w2, b2 = prepared["w2"], prepared["b2"]
    w3, b3 = prepared["w3"], prepared["b3"]
    w4, b4 = prepared["w4"], prepared["b4"]

    vmem_budget, vmem_limit = _vmem_limits()
    x_bytes = jnp.dtype(x.dtype).itemsize
    w_bytes = jnp.dtype(w1.dtype).itemsize

    w_elems = (D * _HIDDEN1 + _HIDDEN1 * _HIDDEN2_PAD
               + _HIDDEN2_PAD * _HIDDEN1 + _HIDDEN1 * D)
    if 2 * w_bytes * w_elems > vmem_budget:
        # TODO(synk): K/N-tiled fallback with an f32 accumulator scratch for very
        # large input_dim; the resident-weight kernel below would blow VMEM.
        raise ValueError(f"input_dim={D} too large for the resident-weight DAE kernel")

    bt = _pick_batch_tile(batch_tile, B, D, x_bytes, w_bytes, vmem_budget)
    grid = (pl.cdiv(B, bt),)   # partial last block handles any batch remainder

    # Weights/biases are grid-invariant blocks, loaded fully into VMEM once.
    full = lambda a: pl.BlockSpec(a.shape, lambda i: (0, 0))

    cost = pl.CostEstimate(
        flops=2 * B * w_elems,
        transcendentals=0,
        bytes_accessed=int(2 * B * D * x_bytes + w_bytes * w_elems
                           + 4 * (2 * _HIDDEN1 + _HIDDEN2_PAD + D)),
    )

    return pl.pallas_call(
        dae_kernel,
        out_shape=jax.ShapeDtypeStruct((B, D), x.dtype),
        grid_spec=pltpu.PrefetchScalarGridSpec(
            num_scalar_prefetch=0,
            grid=grid,
            in_specs=[
                pl.BlockSpec((bt, D), lambda i: (i, 0)),   # x: batch-tiled, full-D block
                full(w1), full(b1),
                full(w2), full(b2),
                full(w3), full(b3),
                full(w4), full(b4),
            ],
            out_specs=pl.BlockSpec((bt, D), lambda i: (i, 0)),
        ),
        compiler_params=pltpu.CompilerParams(
            dimension_semantics=("parallel",),
            vmem_limit_bytes=vmem_limit),
        cost_estimate=cost,
    )(x, w1, b1, w2, b2, w3, b3, w4, b4)


def init_params(key, input_dim):
    """Deterministic parameter init (shapes follow the PyTorch module, stored (in,out))."""
    dims = [(input_dim, 256), (256, 64), (64, 256), (256, input_dim)]
    params = {}
    for idx, (fan_in, fan_out) in enumerate(dims, start=1):
        key, kw, kb = jax.random.split(key, 3)
        bound = 1.0 / jnp.sqrt(fan_in)  # matches nn.Linear default uniform bound
        params[f"w{idx}"] = jax.random.uniform(
            kw, (fan_in, fan_out), jnp.float32, -bound, bound)
        params[f"b{idx}"] = jax.random.uniform(
            kb, (1, fan_out), jnp.float32, -bound, bound)
    return params


def dae_forward_ref(x, params):
    """Plain-JAX reference (eval-mode dropout = identity)."""
    h = jnp.maximum(x @ params["w1"] + params["b1"], 0.0)
    h = jnp.maximum(h @ params["w2"] + params["b2"], 0.0)
    h = jnp.maximum(h @ params["w3"] + params["b3"], 0.0)
    return h @ params["w4"] + params["b4"]


if __name__ == "__main__":
    key = jax.random.PRNGKey(0)
    # Small, deliberately non-aligned shapes: D=120 (< 128 -> masked final lane
    # group, no feature padding) and B=20 (partial last grid block, no batch pad).
    B, D = 20, 120

    key, kx, kp = jax.random.split(key, 3)
    x = jax.random.normal(kx, (B, D), jnp.float32)
    params = init_params(kp, D)
    ref = dae_forward_ref(x, params)

    # f32-operand path (debug/accuracy fallback; tight check, 3-step grid).
    prep_f32 = prepare_params(params, compute_dtype=jnp.float32)
    out_f32 = jax.block_until_ready(dae_forward(x, prep_f32, batch_tile=8))
    assert out_f32.shape == (B, D)
    assert jnp.allclose(out_f32, ref, atol=2e-3, rtol=2e-3), "f32 kernel mismatch"

    # bf16 MXU path (default; f32 accumulation -> loose check).
    prep_bf16 = prepare_params(params)   # compute_dtype=jnp.bfloat16 by default
    out_bf16 = jax.block_until_ready(dae_forward(x, prep_bf16))
    rel_err = jnp.max(jnp.abs(out_bf16 - ref)) / (jnp.max(jnp.abs(ref)) + 1e-6)
    assert float(rel_err) < 5e-2, f"bf16 kernel relative error too large: {float(rel_err)}"

    # Tiny batch (B < 8 -> single full-batch block).
    out_small = jax.block_until_ready(dae_forward(x[:4], prep_bf16))
    assert out_small.shape == (4, D)

    print("KERNEL_OK")
</pallas_src>

<mosaic_0001>
module attributes {stable_mosaic.version = 11 : i64} {
  func.func @dae_kernel(%arg0: i32, %arg1: memref<8x120xf32, #tpu.memory_space<vmem>>, %arg2: memref<120x256xf32, #tpu.memory_space<vmem>>, %arg3: memref<1x256xf32, #tpu.memory_space<vmem>>, %arg4: memref<256x128xf32, #tpu.memory_space<vmem>>, %arg5: memref<1x128xf32, #tpu.memory_space<vmem>>, %arg6: memref<128x256xf32, #tpu.memory_space<vmem>>, %arg7: memref<1x256xf32, #tpu.memory_space<vmem>>, %arg8: memref<256x120xf32, #tpu.memory_space<vmem>>, %arg9: memref<1x120xf32, #tpu.memory_space<vmem>>, %arg10: memref<8x120xf32, #tpu.memory_space<vmem>>) attributes {dimension_semantics = [#tpu.dimension_semantics<parallel>], iteration_bounds = array<i64: 3>, scalar_prefetch = 0 : i64, scratch_operands = 0 : i64, tpu.core_type = #tpu.core_type<tc>, window_params = [{transform_indices = @transform_0, window_bounds = array<i64: 8, 120>}, {pipeline_mode = #tpu.pipeline_mode<synchronous>, transform_indices = @transform_1, window_bounds = array<i64: 120, 256>}, {pipeline_mode = #tpu.pipeline_mode<synchronous>, transform_indices = @transform_2, window_bounds = array<i64: 1, 256>}, {pipeline_mode = #tpu.pipeline_mode<synchronous>, transform_indices = @transform_3, window_bounds = array<i64: 256, 128>}, {pipeline_mode = #tpu.pipeline_mode<synchronous>, transform_indices = @transform_4, window_bounds = array<i64: 1, 128>}, {pipeline_mode = #tpu.pipeline_mode<synchronous>, transform_indices = @transform_5, window_bounds = array<i64: 128, 256>}, {pipeline_mode = #tpu.pipeline_mode<synchronous>, transform_indices = @transform_6, window_bounds = array<i64: 1, 256>}, {pipeline_mode = #tpu.pipeline_mode<synchronous>, transform_indices = @transform_7, window_bounds = array<i64: 256, 120>}, {pipeline_mode = #tpu.pipeline_mode<synchronous>, transform_indices = @transform_8, window_bounds = array<i64: 1, 120>}, {transform_indices = @transform_9, window_bounds = array<i64: 8, 120>}]} {
    %c0 = arith.constant 0 : index
    %c0_0 = arith.constant 0 : index
    %0 = vector.load %arg1[%c0, %c0_0] : memref<8x120xf32, #tpu.memory_space<vmem>>, vector<8x120xf32>
    %c0_1 = arith.constant 0 : index
    %c0_2 = arith.constant 0 : index
    %1 = vector.load %arg2[%c0_1, %c0_2] : memref<120x256xf32, #tpu.memory_space<vmem>>, vector<120x256xf32>
    %cst = arith.constant dense<0.000000e+00> : vector<8x256xf32>
    %2 = tpu.matmul %0, %1, %cst {dimension_numbers = #tpu.dot_dimension_numbers<[1], [0], [0], [1], [0, 0, 1, 1], [], []>} : vector<8x120xf32>, vector<120x256xf32>, vector<8x256xf32> -> vector<8x256xf32>
    %c0_3 = arith.constant 0 : index
    %c0_4 = arith.constant 0 : index
    %3 = vector.load %arg3[%c0_3, %c0_4] : memref<1x256xf32, #tpu.memory_space<vmem>>, vector<1x256xf32>
    %4 = vector.broadcast %3 : vector<1x256xf32> to vector<8x256xf32>
    %5 = arith.addf %2, %4 : vector<8x256xf32>
    %cst_5 = arith.constant 0.000000e+00 : f32
    %6 = vector.broadcast %cst_5 : f32 to vector<8x256xf32>
    %7 = arith.maximumf %5, %6 : vector<8x256xf32>
    %c0_6 = arith.constant 0 : index
    %c0_7 = arith.constant 0 : index
    %8 = vector.load %arg4[%c0_6, %c0_7] : memref<256x128xf32, #tpu.memory_space<vmem>>, vector<256x128xf32>
    %cst_8 = arith.constant dense<0.000000e+00> : vector<8x128xf32>
    %9 = tpu.matmul %7, %8, %cst_8 {dimension_numbers = #tpu.dot_dimension_numbers<[1], [0], [0], [1], [0, 0, 1, 1], [], []>} : vector<8x256xf32>, vector<256x128xf32>, vector<8x128xf32> -> vector<8x128xf32>
    %c0_9 = arith.constant 0 : index
    %c0_10 = arith.constant 0 : index
    %10 = vector.load %arg5[%c0_9, %c0_10] : memref<1x128xf32, #tpu.memory_space<vmem>>, vector<1x128xf32>
    %11 = vector.broadcast %10 : vector<1x128xf32> to vector<8x128xf32>
    %12 = arith.addf %9, %11 : vector<8x128xf32>
    %cst_11 = arith.constant 0.000000e+00 : f32
    %13 = vector.broadcast %cst_11 : f32 to vector<8x128xf32>
    %14 = arith.maximumf %12, %13 : vector<8x128xf32>
    %c0_12 = arith.constant 0 : index
    %c0_13 = arith.constant 0 : index
    %15 = vector.load %arg6[%c0_12, %c0_13] : memref<128x256xf32, #tpu.memory_space<vmem>>, vector<128x256xf32>
    %cst_14 = arith.constant dense<0.000000e+00> : vector<8x256xf32>
    %16 = tpu.matmul %14, %15, %cst_14 {dimension_numbers = #tpu.dot_dimension_numbers<[1], [0], [0], [1], [0, 0, 1, 1], [], []>} : vector<8x128xf32>, vector<128x256xf32>, vector<8x256xf32> -> vector<8x256xf32>
    %c0_15 = arith.constant 0 : index
    %c0_16 = arith.constant 0 : index
    %17 = vector.load %arg7[%c0_15, %c0_16] : memref<1x256xf32, #tpu.memory_space<vmem>>, vector<1x256xf32>
    %18 = vector.broadcast %17 : vector<1x256xf32> to vector<8x256xf32>
    %19 = arith.addf %16, %18 : vector<8x256xf32>
    %cst_17 = arith.constant 0.000000e+00 : f32
    %20 = vector.broadcast %cst_17 : f32 to vector<8x256xf32>
    %21 = arith.maximumf %19, %20 : vector<8x256xf32>
    %c0_18 = arith.constant 0 : index
    %c0_19 = arith.constant 0 : index
    %22 = vector.load %arg8[%c0_18, %c0_19] : memref<256x120xf32, #tpu.memory_space<vmem>>, vector<256x120xf32>
    %cst_20 = arith.constant dense<0.000000e+00> : vector<8x120xf32>
    %23 = tpu.matmul %21, %22, %cst_20 {dimension_numbers = #tpu.dot_dimension_numbers<[1], [0], [0], [1], [0, 0, 1, 1], [], []>} : vector<8x256xf32>, vector<256x120xf32>, vector<8x120xf32> -> vector<8x120xf32>
    %c0_21 = arith.constant 0 : index
    %c0_22 = arith.constant 0 : index
    %24 = vector.load %arg9[%c0_21, %c0_22] : memref<1x120xf32, #tpu.memory_space<vmem>>, vector<1x120xf32>
    %25 = vector.broadcast %24 : vector<1x120xf32> to vector<8x120xf32>
    %26 = arith.addf %23, %25 : vector<8x120xf32>
    %c0_23 = arith.constant 0 : index
    %c0_24 = arith.constant 0 : index
    %27 = vector.load %arg10[%c0_23, %c0_24] : memref<8x120xf32, #tpu.memory_space<vmem>>, vector<8x120xf32>
    tpu.vector_store %arg10[%c0_23, %c0_24], %26 {strides = array<i32>} : memref<8x120xf32, #tpu.memory_space<vmem>>, vector<8x120xf32>,
    return
  }
  func.func @transform_0(%arg0: i32) -> (i32, i32) {
    %c0_i32 = arith.constant 0 : i32
    %c0_i32_0 = arith.constant 0 : i32
    return %arg0, %c0_i32 : i32, i32
  }
  func.func @transform_1(%arg0: i32) -> (i32, i32) {
    %c0_i32 = arith.constant 0 : i32
    %c0_i32_0 = arith.constant 0 : i32
    %c0_i32_1 = arith.constant 0 : i32
    return %c0_i32, %c0_i32_0 : i32, i32
  }
  func.func @transform_2(%arg0: i32) -> (i32, i32) {
    %c0_i32 = arith.constant 0 : i32
    %c0_i32_0 = arith.constant 0 : i32
    %c0_i32_1 = arith.constant 0 : i32
    return %c0_i32, %c0_i32_0 : i32, i32
  }
  func.func @transform_3(%arg0: i32) -> (i32, i32) {
    %c0_i32 = arith.constant 0 : i32
    %c0_i32_0 = arith.constant 0 : i32
    %c0_i32_1 = arith.constant 0 : i32
    return %c0_i32, %c0_i32_0 : i32, i32
  }
  func.func @transform_4(%arg0: i32) -> (i32, i32) {
    %c0_i32 = arith.constant 0 : i32
    %c0_i32_0 = arith.constant 0 : i32
    %c0_i32_1 = arith.constant 0 : i32
    return %c0_i32, %c0_i32_0 : i32, i32
  }
  func.func @transform_5(%arg0: i32) -> (i32, i32) {
    %c0_i32 = arith.constant 0 : i32
    %c0_i32_0 = arith.constant 0 : i32
    %c0_i32_1 = arith.constant 0 : i32
    return %c0_i32, %c0_i32_0 : i32, i32
  }
  func.func @transform_6(%arg0: i32) -> (i32, i32) {
    %c0_i32 = arith.constant 0 : i32
    %c0_i32_0 = arith.constant 0 : i32
    %c0_i32_1 = arith.constant 0 : i32
    return %c0_i32, %c0_i32_0 : i32, i32
  }
  func.func @transform_7(%arg0: i32) -> (i32, i32) {
    %c0_i32 = arith.constant 0 : i32
    %c0_i32_0 = arith.constant 0 : i32
    %c0_i32_1 = arith.constant 0 : i32
    return %c0_i32, %c0_i32_0 : i32, i32
  }
  func.func @transform_8(%arg0: i32) -> (i32, i32) {
    %c0_i32 = arith.constant 0 : i32
    %c0_i32_0 = arith.constant 0 : i32
    %c0_i32_1 = arith.constant 0 : i32
    return %c0_i32, %c0_i32_0 : i32, i32
  }
  func.func @transform_9(%arg0: i32) -> (i32, i32) {
    %c0_i32 = arith.constant 0 : i32
    %c0_i32_0 = arith.constant 0 : i32
    return %arg0, %c0_i32 : i32, i32
  }
}

</mosaic_0001>

<llo_original>
// kernel: dae_forward.1
$region0: #{dae_forward.1}
  #allocation0 [shape = 'u32[]', space=smem, size = 0x4, offset = 0x4, fixed_abs, tag = 'smem constant byte address 0x4 - core index']
  #allocation1 [shape = 'u32[144,128]{1,0:T(1,128)}', space=vmem, size = 0x12000, scoped, tag = 'internal scratch']
  %s0 = inlined_call_operand.hbm [shape: f32[20,120], index: 0, kind: input, shape index: {}]
  %s1 = inlined_call_operand.hbm [shape: f32[120,256], index: 1, kind: input, shape index: {}]
  %s2 = inlined_call_operand.vmem [shape: f32[1,256], index: 2, kind: input, shape index: {}]
  %s3 = inlined_call_operand.vmem [shape: f32[256,128], index: 3, kind: input, shape index: {}]
  %s4 = inlined_call_operand.hbm [shape: f32[1,128], index: 4, kind: input, shape index: {}]
  %s5 = inlined_call_operand.vmem [shape: f32[128,256], index: 5, kind: input, shape index: {}]
  %s6 = inlined_call_operand.hbm [shape: f32[1,256], index: 6, kind: input, shape index: {}]
  %s7 = inlined_call_operand.vmem [shape: f32[256,120], index: 7, kind: input, shape index: {}]
  %s8 = inlined_call_operand.hbm [shape: f32[1,120], index: 8, kind: input, shape index: {}]
  %s9 = inlined_call_operand.hbm [shape: f32[20,120], index: 9, kind: output, shape index: {}]
  %s10 = sld [smem:[#allocation0]]
  $region89: #{dae_forward.1} parent=0
    _
  %s12 = ssub.s32 1, %s10
  %s13 = scalar_select 0, %s12, %s10
  $region1: #{dae_forward.1} parent=0
    #allocation2 [shape = 'u8[8192]{0}', space=vmem, size = 0x2000, scoped, tag = 'input window, operand 0']
    #allocation3 [shape = 's32[2]{0}', space=sflag, size = 0x8, scoped, tag = 'scoped memory for dae_forward.1']
    #allocation4 [shape = 's32[2]{0}', space=sflag, size = 0x8, scoped, tag = 'scoped memory for dae_forward.1']
    #allocation5 [shape = 'u8[122880]{0}', space=vmem, size = 0x1e000, scoped, tag = 'input window, operand 1, single buffered']
    #allocation6 [shape = 's32[1]{0}', space=sflag, size = 0x4, scoped, tag = 'scoped memory for dae_forward.1']
    #allocation7 [shape = 'u8[512]{0}', space=vmem, size = 0x400, scoped, tag = 'input window, operand 4, single buffered']
    #allocation8 [shape = 'u8[1024]{0}', space=vmem, size = 0x400, scoped, tag = 'input window, operand 6, single buffered']
    #allocation9 [shape = 's32[1]{0}', space=sflag, size = 0x4, scoped, tag = 'scoped memory for dae_forward.1']
    #allocation10 [shape = 'u8[512]{0}', space=vmem, size = 0x400, scoped, tag = 'input window, operand 8, single buffered']
    #allocation11 [shape = 'u8[8192]{0}', space=vmem, size = 0x2000, scoped, tag = 'output window, operand 0']
    %14 = vsyncpa [#allocation3], 0
    %s15 = scalar_lea.sflag [#allocation3], 1
    %16 = vsyncpa %s15, 0
    %17 = vsyncpa [#allocation6], 0
    %18 = vsyncpa [#allocation9], 0
    %19 = vsyncpa [#allocation4], 0
    %s20 = scalar_lea.sflag [#allocation4], 1
    %21 = vsyncpa %s20, 0
    loop: start=0, step=1, limit=5
    $region2: #{dae_forward.1} parent=1 // loop_pre_header
      _
    $region3: #{dae_forward.1} parent=1 // loop_header
      %s23 = sphi 0, %s27
      %p24 = scmp.ge.s32.totalorder %s23, 5
      %s33 = sphi 0, %s35
      %s36 = sphi 0, %s33
      %s37 = sphi 0, %s36
      %s53 = sphi 0, %s37
      %s57 = sphi 0, %s57
      %s59 = sphi 0, %s57
      %s60 = sphi 0, %s59
      %s74 = sphi 0, %s60
      %s78 = sphi 0, %s78
      %s80 = sphi 0, %s78
      %s81 = sphi 0, %s80
      %s95 = sphi 0, %s81
      %s99 = sphi 0, %s99
      %s101 = sphi 0, %s99
      %s102 = sphi 0, %s101
      %s116 = sphi 0, %s102
      %s120 = sphi 0, %s120
      %s122 = sphi 0, %s120
      %s123 = sphi 0, %s122
      %s137 = sphi 0, %s123
      %s141 = sphi 0, %s141
      %s143 = sphi 0, %s141
      %s144 = sphi 0, %s143
      %s158 = sphi 0, %s144
      %s162 = sphi 0, %s162
      %s164 = sphi 0, %s162
      %s165 = sphi 0, %s164
      %s179 = sphi 0, %s165
      %s183 = sphi 0, %s183
      %s185 = sphi 0, %s183
      %s186 = sphi 0, %s185
      %s200 = sphi 0, %s186
      %s204 = sphi 0, %s204
      %s206 = sphi 0, %s204
      %s207 = sphi 0, %s206
      %s221 = sphi 0, %s207
      %s227 = sphi 0, %s229
      %s230 = sphi 0, %s227
      %s231 = sphi 0, %s230
      %s247 = sphi 0, %s231
    $region4: #{dae_forward.1} parent=1 // loop_header_branch
      %26 = sbr.rel (%p24) target = $region8
    $region5: #{dae_forward.1} parent=1 // loop_body
      %s28 = ssub.s32 %s23, 1
      %s29 = ssub.s32 %s23, 2
      %s30 = sadd.s32 %s23, 1
      %s31 = ssub.s32 %s23, %s30
      %p32 = scmp.eq.s32.totalorder %s31, 0
      %s34 = sadd.s32 %s33, 1
      %s35 = scalar_select %p32, %s33, %s34
      %p38 = pneg %p32
      %p39 = scmp.eq.s32.totalorder %s23, 2
      %p40 = por %p38, %p39
      %p41 = scmp.ne.s32.totalorder %s33, %s36
      %p42 = scmp.eq.s32.totalorder %s23, 0
      %p43 = por %p41, %p42
      %p44 = scmp.ne.s32.totalorder %s33, %s36
      %p45 = scmp.eq.s32.totalorder %s28, 2
      %p46 = por %p44, %p45
      %p47 = scmp.ne.s32.totalorder %s36, %s37
      %p48 = scmp.eq.s32.totalorder %s28, 0
      %p49 = por %p47, %p48
      %p50 = scmp.ne.s32.totalorder %s36, %s37
      %p51 = scmp.eq.s32.totalorder %s29, 2
      %p52 = por %p50, %p51
      %p54 = scmp.ne.s32.totalorder %s37, %s53
      %p55 = scmp.eq.s32.totalorder %s29, 0
      %p56 = por %p54, %p55
      %s58 = sadd.s32 %s57, 1
      %p61 = scmp.eq.s32.totalorder %s23, 2
      %p62 = scmp.ne.s32.totalorder %s57, %s59
      %p63 = scmp.eq.s32.totalorder %s23, 0
      %p64 = por %p62, %p63
      %p65 = scmp.ne.s32.totalorder %s57, %s59
      %p66 = scmp.eq.s32.totalorder %s28, 2
      %p67 = por %p65, %p66
      %p68 = scmp.ne.s32.totalorder %s59, %s60
      %p69 = scmp.eq.s32.totalorder %s28, 0
      %p70 = por %p68, %p69
      %p71 = scmp.ne.s32.totalorder %s59, %s60
      %p72 = scmp.eq.s32.totalorder %s29, 2
      %p73 = por %p71, %p72
      %p75 = scmp.ne.s32.totalorder %s60, %s74
      %p76 = scmp.eq.s32.totalorder %s29, 0
      %p77 = por %p75, %p76
      %s79 = sadd.s32 %s78, 1
      %p82 = scmp.eq.s32.totalorder %s23, 2
      %p83 = scmp.ne.s32.totalorder %s78, %s80
      %p84 = scmp.eq.s32.totalorder %s23, 0
      %p85 = por %p83, %p84
      %p86 = scmp.ne.s32.totalorder %s78, %s80
      %p87 = scmp.eq.s32.totalorder %s28, 2
      %p88 = por %p86, %p87
      %p89 = scmp.ne.s32.totalorder %s80, %s81
      %p90 = scmp.eq.s32.totalorder %s28, 0
      %p91 = por %p89, %p90
      %p92 = scmp.ne.s32.totalorder %s80, %s81
      %p93 = scmp.eq.s32.totalorder %s29, 2
      %p94 = por %p92, %p93
      %p96 = scmp.ne.s32.totalorder %s81, %s95
      %p97 = scmp.eq.s32.totalorder %s29, 0
      %p98 = por %p96, %p97
      %s100 = sadd.s32 %s99, 1
      %p103 = scmp.eq.s32.totalorder %s23, 2
      %p104 = scmp.ne.s32.totalorder %s99, %s101
      %p105 = scmp.eq.s32.totalorder %s23, 0
      %p106 = por %p104, %p105
      %p107 = scmp.ne.s32.totalorder %s99, %s101
      %p108 = scmp.eq.s32.totalorder %s28, 2
      %p109 = por %p107, %p108
      %p110 = scmp.ne.s32.totalorder %s101, %s102
      %p111 = scmp.eq.s32.totalorder %s28, 0
      %p112 = por %p110, %p111
      %p113 = scmp.ne.s32.totalorder %s101, %s102
      %p114 = scmp.eq.s32.totalorder %s29, 2
      %p115 = por %p113, %p114
      %p117 = scmp.ne.s32.totalorder %s102, %s116
      %p118 = scmp.eq.s32.totalorder %s29, 0
      %p119 = por %p117, %p118
      %s121 = sadd.s32 %s120, 1
      %p124 = scmp.eq.s32.totalorder %s23, 2
      %p125 = scmp.ne.s32.totalorder %s120, %s122
      %p126 = scmp.eq.s32.totalorder %s23, 0
      %p127 = por %p125, %p126
      %p128 = scmp.ne.s32.totalorder %s120, %s122
      %p129 = scmp.eq.s32.totalorder %s28, 2
      %p130 = por %p128, %p129
      %p131 = scmp.ne.s32.totalorder %s122, %s123
      %p132 = scmp.eq.s32.totalorder %s28, 0
      %p133 = por %p131, %p132
      %p134 = scmp.ne.s32.totalorder %s122, %s123
      %p135 = scmp.eq.s32.totalorder %s29, 2
      %p136 = por %p134, %p135
      %p138 = scmp.ne.s32.totalorder %s123, %s137
      %p139 = scmp.eq.s32.totalorder %s29, 0
      %p140 = por %p138, %p139
      %s142 = sadd.s32 %s141, 1
      %p145 = scmp.eq.s32.totalorder %s23, 2
      %p146 = scmp.ne.s32.totalorder %s141, %s143
      %p147 = scmp.eq.s32.totalorder %s23, 0
      %p148 = por %p146, %p147
      %p149 = scmp.ne.s32.totalorder %s141, %s143
      %p150 = scmp.eq.s32.totalorder %s28, 2
      %p151 = por %p149, %p150
      %p152 = scmp.ne.s32.totalorder %s143, %s144
      %p153 = scmp.eq.s32.totalorder %s28, 0
      %p154 = por %p152, %p153
      %p155 = scmp.ne.s32.totalorder %s143, %s144
      %p156 = scmp.eq.s32.totalorder %s29, 2
      %p157 = por %p155, %p156
      %p159 = scmp.ne.s32.totalorder %s144, %s158
      %p160 = scmp.eq.s32.totalorder %s29, 0
      %p161 = por %p159, %p160
      %s163 = sadd.s32 %s162, 1
      %p166 = scmp.eq.s32.totalorder %s23, 2
      %p167 = scmp.ne.s32.totalorder %s162, %s164
      %p168 = scmp.eq.s32.totalorder %s23, 0
      %p169 = por %p167, %p168
      %p170 = scmp.ne.s32.totalorder %s162, %s164
      %p171 = scmp.eq.s32.totalorder %s28, 2
      %p172 = por %p170, %p171
      %p173 = scmp.ne.s32.totalorder %s164, %s165
      %p174 = scmp.eq.s32.totalorder %s28, 0
      %p175 = por %p173, %p174
      %p176 = scmp.ne.s32.totalorder %s164, %s165
      %p177 = scmp.eq.s32.totalorder %s29, 2
      %p178 = por %p176, %p177
      %p180 = scmp.ne.s32.totalorder %s165, %s179
      %p181 = scmp.eq.s32.totalorder %s29, 0
      %p182 = por %p180, %p181
      %s184 = sadd.s32 %s183, 1
      %p187 = scmp.eq.s32.totalorder %s23, 2
      %p188 = scmp.ne.s32.totalorder %s183, %s185
      %p189 = scmp.eq.s32.totalorder %s23, 0
      %p190 = por %p188, %p189
      %p191 = scmp.ne.s32.totalorder %s183, %s185
      %p192 = scmp.eq.s32.totalorder %s28, 2
      %p193 = por %p191, %p192
      %p194 = scmp.ne.s32.totalorder %s185, %s186
      %p195 = scmp.eq.s32.totalorder %s28, 0
      %p196 = por %p194, %p195
      %p197 = scmp.ne.s32.totalorder %s185, %s186
      %p198 = scmp.eq.s32.totalorder %s29, 2
      %p199 = por %p197, %p198
      %p201 = scmp.ne.s32.totalorder %s186, %s200
      %p202 = scmp.eq.s32.totalorder %s29, 0
      %p203 = por %p201, %p202
      %s205 = sadd.s32 %s204, 1
      %p208 = scmp.eq.s32.totalorder %s23, 2
      %p209 = scmp.ne.s32.totalorder %s204, %s206
      %p210 = scmp.eq.s32.totalorder %s23, 0
      %p211 = por %p209, %p210
      %p212 = scmp.ne.s32.totalorder %s204, %s206
      %p213 = scmp.eq.s32.totalorder %s28, 2
      %p214 = por %p212, %p213
      %p215 = scmp.ne.s32.totalorder %s206, %s207
      %p216 = scmp.eq.s32.totalorder %s28, 0
      %p217 = por %p215, %p216
      %p218 = scmp.ne.s32.totalorder %s206, %s207
      %p219 = scmp.eq.s32.totalorder %s29, 2
      %p220 = por %p218, %p219
      %p222 = scmp.ne.s32.totalorder %s207, %s221
      %p223 = scmp.eq.s32.totalorder %s29, 0
      %p224 = por %p222, %p223
      %s225 = ssub.s32 %s23, %s30
      %p226 = scmp.eq.s32.totalorder %s225, 0
      %s228 = sadd.s32 %s227, 1
      %s229 = scalar_select %p226, %s227, %s228
      %p232 = pneg %p226
      %p233 = scmp.eq.s32.totalorder %s23, 2
      %p234 = por %p232, %p233
      %p235 = scmp.ne.s32.totalorder %s227, %s230
      %p236 = scmp.eq.s32.totalorder %s23, 0
      %p237 = por %p235, %p236
      %p238 = scmp.ne.s32.totalorder %s227, %s230
      %p239 = scmp.eq.s32.totalorder %s28, 2
      %p240 = por %p238, %p239
      %p241 = scmp.ne.s32.totalorder %s230, %s231
      %p242 = scmp.eq.s32.totalorder %s28, 0
      %p243 = por %p241, %p242
      %p244 = scmp.ne.s32.totalorder %s230, %s231
      %p245 = scmp.eq.s32.totalorder %s29, 2
      %p246 = por %p244, %p245
      %p248 = scmp.ne.s32.totalorder %s231, %s247
      %p249 = scmp.eq.s32.totalorder %s29, 0
      %p250 = por %p248, %p249
      %p251 = scmp.le.s32.totalorder 1, %s23
      %p252 = scmp.lt.s32.totalorder %s23, 4
      %p253 = pnand %p251, %p252
      %p254 = pneg %p253
      // Predicated region
      $region9: #{dae_forward.1} parent=5 // pred_check
        _
      $region10: #{dae_forward.1} parent=5 // pred_check_branch
        %256 = sbr.rel (%p253) target = $region12
      $region11: #{dae_forward.1} parent=5 // pred_region
        %s257 = ssub.s32 %s23, 1
        // Predicated region
        $region13: #{dae_forward.1} parent=11 // pred_check
          %p258 = pneg %p70
        $region14: #{dae_forward.1} parent=11 // pred_check_branch
          %260 = sbr.rel (%p258) target = $region16
        $region15: #{dae_forward.1} parent=11 // pred_region
          %s262 = ssub.s32 3840, 3840
          %263 = vsyncadd [#allocation6], %s262
          %s264 = sshll.u32 [#allocation5], 4
          %s265 = int_to_ptr.vmem [resolvable:$true] %s264
          %270 = dma.hbm_to_vmem [thread:$0]  %s1, 3840, %s265, [#allocation6], 256, 256, 16
        $region16: #{dae_forward.1} parent=11 // pred_fallthru
          _
        // Predicated region
        $region17: #{dae_forward.1} parent=11 // pred_check
          %p271 = pneg %p91
        $region18: #{dae_forward.1} parent=11 // pred_check_branch
          %273 = sbr.rel (%p271) target = $region20
        $region19: #{dae_forward.1} parent=11 // pred_region
          _
        $region20: #{dae_forward.1} parent=11 // pred_fallthru
          _
        // Predicated region
        $region21: #{dae_forward.1} parent=11 // pred_check
          %p274 = pneg %p112
        $region22: #{dae_forward.1} parent=11 // pred_check_branch
          %276 = sbr.rel (%p274) target = $region24
        $region23: #{dae_forward.1} parent=11 // pred_region
          _
        $region24: #{dae_forward.1} parent=11 // pred_fallthru
          _
        // Predicated region
        $region25: #{dae_forward.1} parent=11 // pred_check
          %p277 = pneg %p133
        $region26: #{dae_forward.1} parent=11 // pred_check_branch
          %279 = sbr.rel (%p277) target = $region28
        $region27: #{dae_forward.1} parent=11 // pred_region
          %s281 = ssub.s32 16, 16
          %282 = vsyncadd [#allocation6], %s281
          %s284 = sshll.u32 [#allocation7], 4
          %s285 = int_to_ptr.vmem [resolvable:$true] %s284
          %287 = dma.hbm_to_vmem [thread:$0]  %s4, 16, %s285, [#allocation6]
        $region28: #{dae_forward.1} parent=11 // pred_fallthru
          _
        // Predicated region
        $region29: #{dae_forward.1} parent=11 // pred_check
          %p288 = pneg %p154
        $region30: #{dae_forward.1} parent=11 // pred_check_branch
          %290 = sbr.rel (%p288) target = $region32
        $region31: #{dae_forward.1} parent=11 // pred_region
          _
        $region32: #{dae_forward.1} parent=11 // pred_fallthru
          _
        // Predicated region
        $region33: #{dae_forward.1} parent=11 // pred_check
          %p291 = pneg %p175
        $region34: #{dae_forward.1} parent=11 // pred_check_branch
          %293 = sbr.rel (%p291) target = $region36
        $region35: #{dae_forward.1} parent=11 // pred_region
          %s295 = ssub.s32 32, 32
          %296 = vsyncadd [#allocation9], %s295
          %s298 = sshll.u32 [#allocation8], 4
          %s299 = int_to_ptr.vmem [resolvable:$true] %s298
          %301 = dma.hbm_to_vmem [thread:$0]  %s6, 32, %s299, [#allocation9]
        $region36: #{dae_forward.1} parent=11 // pred_fallthru
          _
        // Predicated region
        $region37: #{dae_forward.1} parent=11 // pred_check
          %p302 = pneg %p196
        $region38: #{dae_forward.1} parent=11 // pred_check_branch
          %304 = sbr.rel (%p302) target = $region40
        $region39: #{dae_forward.1} parent=11 // pred_region
          _
        $region40: #{dae_forward.1} parent=11 // pred_fallthru
          _
        // Predicated region
        $region41: #{dae_forward.1} parent=11 // pred_check
          %p305 = pneg %p217
        $region42: #{dae_forward.1} parent=11 // pred_check_branch
          %307 = sbr.rel (%p305) target = $region44
        $region43: #{dae_forward.1} parent=11 // pred_region
          %s309 = ssub.s32 16, 16
          %310 = vsyncadd [#allocation9], %s309
          %s312 = sshll.u32 [#allocation10], 4
          %s313 = int_to_ptr.vmem [resolvable:$true] %s312
          %315 = dma.hbm_to_vmem [thread:$0]  %s8, 16, %s313, [#allocation9]
        $region44: #{dae_forward.1} parent=11 // pred_fallthru
          _
      $region12: #{dae_forward.1} parent=5 // pred_fallthru
        _
      %p316 = scmp.lt.s32.totalorder %s23, 3
      // Predicated region
      $region45: #{dae_forward.1} parent=5 // pred_check
        %p317 = pneg %p316
      $region46: #{dae_forward.1} parent=5 // pred_check_branch
        %319 = sbr.rel (%p317) target = $region48
      $region47: #{dae_forward.1} parent=5 // pred_region
        // Predicated region
        $region49: #{dae_forward.1} parent=47 // pred_check
          %p320 = pneg %p43
        $region50: #{dae_forward.1} parent=47 // pred_check_branch
          %322 = sbr.rel (%p320) target = $region52
        $region51: #{dae_forward.1} parent=47 // pred_region
          %s323 = sand.u32 %s33, 1
          %s324 = scalar_lea.sflag [#allocation3], %s323
          %s325 = sand.u32 %s33, 1
          %s326 = smul.addr %s325, 8
          %s327 = scalar_lea.vmem [#allocation2], %s326
          %s329 = ssub.s32 128, 128
          %330 = vsyncadd %s324, %s329
          %s331 = smul.addr %s23, 128
          %s332 = scalar_lea.hbm %s0, %s331
          %s334 = sshll.u32 %s327, 4
          %s335 = int_to_ptr.vmem [resolvable:$true] %s334
          %337 = dma.hbm_to_vmem [thread:$0]  %s332, 128, %s335, %s324
        $region52: #{dae_forward.1} parent=47 // pred_fallthru
          _
      $region48: #{dae_forward.1} parent=5 // pred_fallthru
        _
      %p338 = scmp.le.s32.totalorder 1, %s23
      %p339 = scmp.lt.s32.totalorder %s23, 4
      %p340 = pnand %p338, %p339
      %p341 = pneg %p340
      // Predicated region
      $region53: #{dae_forward.1} parent=5 // pred_check
        _
      $region54: #{dae_forward.1} parent=5 // pred_check_branch
        %343 = sbr.rel (%p340) target = $region56
      $region55: #{dae_forward.1} parent=5 // pred_region
        %s344 = ssub.s32 %s23, 1
        %s345 = sand.u32 %s36, 1
        %s346 = scalar_lea.sflag [#allocation3], %s345
        %s347 = sand.u32 %s36, 1
        %s348 = smul.addr %s347, 8
        %s349 = scalar_lea.vmem [#allocation2], %s348
        // Predicated region
        $region57: #{dae_forward.1} parent=55 // pred_check
          %p350 = pneg %p49
        $region58: #{dae_forward.1} parent=55 // pred_check_branch
          %352 = sbr.rel (%p350) target = $region60
        $region59: #{dae_forward.1} parent=55 // pred_region
          %353 = dma.done %s346, 128
        $region60: #{dae_forward.1} parent=55 // pred_fallthru
          _
        // Predicated region
        $region61: #{dae_forward.1} parent=55 // pred_check
          %p354 = pneg %p70
        $region62: #{dae_forward.1} parent=55 // pred_check_branch
          %356 = sbr.rel (%p354) target = $region64
        $region63: #{dae_forward.1} parent=55 // pred_region
          %357 = dma.done [#allocation6], 3840
        $region64: #{dae_forward.1} parent=55 // pred_fallthru
          _
        // Predicated region
        $region65: #{dae_forward.1} parent=55 // pred_check
          %p358 = pneg %p133
        $region66: #{dae_forward.1} parent=55 // pred_check_branch
          %360 = sbr.rel (%p358) target = $region68
        $region67: #{dae_forward.1} parent=55 // pred_region
          %361 = dma.done [#allocation6], 16
        $region68: #{dae_forward.1} parent=55 // pred_fallthru
          _
        // Predicated region
        $region69: #{dae_forward.1} parent=55 // pred_check
          %p362 = pneg %p175
        $region70: #{dae_forward.1} parent=55 // pred_check_branch
          %364 = sbr.rel (%p362) target = $region72
        $region71: #{dae_forward.1} parent=55 // pred_region
          %365 = dma.done [#allocation9], 32
        $region72: #{dae_forward.1} parent=55 // pred_fallthru
          _
        // Predicated region
        $region73: #{dae_forward.1} parent=55 // pred_check
          %p366 = pneg %p217
        $region74: #{dae_forward.1} parent=55 // pred_check_branch
          %368 = sbr.rel (%p366) target = $region76
        $region75: #{dae_forward.1} parent=55 // pred_region
          %369 = dma.done [#allocation9], 16
        $region76: #{dae_forward.1} parent=55 // pred_fallthru
          _
        %s370 = sand.u32 %s36, 1
        %s371 = scalar_lea.sflag [#allocation3], %s370
        %s372 = sand.u32 %s36, 1
        %s373 = smul.addr %s372, 8
        %s374 = scalar_lea.vmem [#allocation2], %s373
        %p375 = pneg %p49
        %p376 = pneg %p46
        %p377 = pneg %p70
        %p378 = pneg %p67
        %p379 = pneg %p91
        %p380 = pneg %p88
        %p381 = pneg %p112
        %p382 = pneg %p109
        %p383 = pneg %p133
        %p384 = pneg %p130
        %p385 = pneg %p154
        %p386 = pneg %p151
        %p387 = pneg %p175
        %p388 = pneg %p172
        %p389 = pneg %p196
        %p390 = pneg %p193
        %p391 = pneg %p217
        %p392 = pneg %p214
        %p393 = pneg %p243
        %p394 = pneg %p240
        %s395 = sand.u32 %s230, 1
        %s396 = scalar_lea.sflag [#allocation4], %s395
        %s397 = sand.u32 %s230, 1
        %s398 = smul.addr %s397, 8
        %s399 = scalar_lea.vmem [#allocation11], %s398
        %v400 = vld [vmem:[%s349] sm:$0xff]
        %v401 = vld [vmem:[#allocation5] sm:$0xff]
        %v402 = vld [vmem:[#allocation5 + $0x8] sm:$0xff]
        %v403 = vld [vmem:[#allocation5 + $0x10] sm:$0xff]
        %v404 = vld [vmem:[#allocation5 + $0x18] sm:$0xff]
        %v405 = vld [vmem:[#allocation5 + $0x20] sm:$0xff]
        %v406 = vld [vmem:[#allocation5 + $0x28] sm:$0xff]
        %v407 = vld [vmem:[#allocation5 + $0x30] sm:$0xff]
        %v408 = vld [vmem:[#allocation5 + $0x38] sm:$0xff]
        %v409 = vld [vmem:[#allocation5 + $0x40] sm:$0xff]
        %v410 = vld [vmem:[#allocation5 + $0x48] sm:$0xff]
        %v411 = vld [vmem:[#allocation5 + $0x50] sm:$0xff]
        %v412 = vld [vmem:[#allocation5 + $0x58] sm:$0xff]
        %v413 = vld [vmem:[#allocation5 + $0x60] sm:$0xff]
        %v414 = vld [vmem:[#allocation5 + $0x68] sm:$0xff]
        %v415 = vld [vmem:[#allocation5 + $0x70] sm:$0xff]
        %v416 = vld [vmem:[#allocation5 + $0x78] sm:$0xff]
        %v417 = vld [vmem:[#allocation5 + $0x80] sm:$0xff]
        %v418 = vld [vmem:[#allocation5 + $0x88] sm:$0xff]
        %v419 = vld [vmem:[#allocation5 + $0x90] sm:$0xff]
        %v420 = vld [vmem:[#allocation5 + $0x98] sm:$0xff]
        %v421 = vld [vmem:[#allocation5 + $0xa0] sm:$0xff]
        %v422 = vld [vmem:[#allocation5 + $0xa8] sm:$0xff]
        %v423 = vld [vmem:[#allocation5 + $0xb0] sm:$0xff]
        %v424 = vld [vmem:[#allocation5 + $0xb8] sm:$0xff]
        %v425 = vld [vmem:[#allocation5 + $0xc0] sm:$0xff]
        %v426 = vld [vmem:[#allocation5 + $0xc8] sm:$0xff]
        %v427 = vld [vmem:[#allocation5 + $0xd0] sm:$0xff]
        %v428 = vld [vmem:[#allocation5 + $0xd8] sm:$0xff]
        %v429 = vld [vmem:[#allocation5 + $0xe0] sm:$0xff]
        %v430 = vld [vmem:[#allocation5 + $0xe8] sm:$0xff]
        %v431 = vld [vmem:[%s2] sm:$0x3]
        %v433 = vlaneseq
        %v434 = vshrl.u32 %v433, 7
        %v435 = vsub.s32 0, %v434
        %v436 = vrot.slane %v431, %v435
        %v437 = vlaneseq
        %v438 = vshrl.u32 %v437, 7
        %v439 = vsub.s32 1, %v438
        %v440 = vrot.slane %v431, %v439
        %vm443 = vcmask 982016
        %v445 = vsel %vm443, %v400, 0
        %447 = vmatprep.subr.mxu0 %v402
        %448 = vmatpush1.msra.mxu0 %v401
        %449 = vmatprep.subr.mxu0 %v404
        %450 = vmatpush1.msra.mxu0 %v403
        %451 = vmatprep.subr.mxu0 %v406
        %452 = vmatpush1.msra.mxu0 %v405
        %453 = vmatprep.subr.mxu0 %v408
        %454 = vmatpush1.msra.mxu0 %v407
        %455 = vmatprep.subr.mxu0 %v410
        %456 = vmatpush1.msra.mxu0 %v409
        %457 = vmatprep.subr.mxu0 %v412
        %458 = vmatpush1.msra.mxu0 %v411
        %459 = vmatprep.subr.mxu0 %v414
        %460 = vmatpush1.msra.mxu0 %v413
        %461 = vmatprep.subr.mxu0 %v416
        %462 = vmatpush1.msra.mxu0 %v415
        %463 = vmatprep.subr.mxu0 %v418
        %464 = vmatpush1.msra.mxu0 %v417
        %465 = vmatprep.subr.mxu0 %v420
        %466 = vmatpush1.msra.mxu0 %v419
        %467 = vmatprep.subr.mxu0 %v422
        %468 = vmatpush1.msra.mxu0 %v421
        %469 = vmatprep.subr.mxu0 %v424
        %470 = vmatpush1.msra.mxu0 %v423
        %471 = vmatprep.subr.mxu0 %v426
        %472 = vmatpush1.msra.mxu0 %v425
        %473 = vmatprep.subr.mxu0 %v428
        %474 = vmatpush1.msra.mxu0 %v427
        %475 = vmatprep.subr.mxu0 %v430
        %476 = vmatpush1.msra.mxu0 %v429
        %477 = vmatprep.subr.mxu0 0.0
        %478 = vmatpush1.msra.mxu0 0.0
        %479 = vmatprep.subr.mxu0 0.0
        %480 = vmatpush1.msra.mxu0 0.0
        %481 = vmatprep.subr.mxu0 0.0
        %482 = vmatpush1.msra.mxu0 0.0
        %483 = vmatprep.subr.mxu0 0.0
        %484 = vmatpush1.msra.mxu0 0.0
        %485 = vmatprep.subr.mxu0 0.0
        %486 = vmatpush1.msra.mxu0 0.0
        %487 = vmatprep.subr.mxu0 0.0
        %488 = vmatpush1.msra.mxu0 0.0
        %489 = vmatprep.subr.mxu0 0.0
        %490 = vmatpush1.msra.mxu0 0.0
        %491 = vmatprep.subr.mxu0 0.0
        %492 = vmatpush1.msra.mxu0 0.0
        %493 = vmatprep.subr.mxu0 0.0
        %494 = vmatpush1.msra.mxu0 0.0
        %495 = vmatprep.subr.mxu0 0.0
        %496 = vmatpush1.msra.mxu0 0.0
        %497 = vmatprep.subr.mxu0 0.0
        %498 = vmatpush1.msra.mxu0 0.0
        %499 = vmatprep.subr.mxu0 0.0
        %500 = vmatpush1.msra.mxu0 0.0
        %501 = vmatprep.subr.mxu0 0.0
        %502 = vmatpush1.msra.mxu0 0.0
        %503 = vmatprep.subr.mxu0 0.0
        %504 = vmatpush1.msra.mxu0 0.0
        %505 = vmatprep.subr.mxu0 0.0
        %506 = vmatpush1.msra.mxu0 0.0
        %507 = vmatprep.subr.mxu0 0.0
        %508 = vmatpush1.msra.mxu0 0.0
        %509 = vmatprep.subr.mxu0 0.0
        %510 = vmatpush1.msra.mxu0 0.0
        %511 = vmatprep.mubr.f32.mxu0 0.0
        %512 = vmatmul.mubr.f32.gmra.mrb[0].mxu0 %v445
        %v513 = vpop.f32.mrb[0].mxu0
        %v514 = vadd.f32 %v436, %v513
        %v515 = vpop.f32.mrb[0].mxu0
        %v516 = vadd.f32 %v440, %v515
        %517 = vdwg.mxu0
        %v518 = vmax.f32 %v514, 0.0
        %v519 = vmax.f32 %v516, 0.0
        %v520 = vld [vmem:[%s3] sm:$0xff]
        %v521 = vld [vmem:[%s3 + $0x8] sm:$0xff]
        %v522 = vld [vmem:[%s3 + $0x10] sm:$0xff]
        %v523 = vld [vmem:[%s3 + $0x18] sm:$0xff]
        %v524 = vld [vmem:[%s3 + $0x20] sm:$0xff]
        %v525 = vld [vmem:[%s3 + $0x28] sm:$0xff]
        %v526 = vld [vmem:[%s3 + $0x30] sm:$0xff]
        %v527 = vld [vmem:[%s3 + $0x38] sm:$0xff]
        %v528 = vld [vmem:[%s3 + $0x40] sm:$0xff]
        %v529 = vld [vmem:[%s3 + $0x48] sm:$0xff]
        %v530 = vld [vmem:[%s3 + $0x50] sm:$0xff]
        %v531 = vld [vmem:[%s3 + $0x58] sm:$0xff]
        %v532 = vld [vmem:[%s3 + $0x60] sm:$0xff]
        %v533 = vld [vmem:[%s3 + $0x68] sm:$0xff]
        %v534 = vld [vmem:[%s3 + $0x70] sm:$0xff]
        %v535 = vld [vmem:[%s3 + $0x78] sm:$0xff]
        %v536 = vld [vmem:[%s3 + $0x80] sm:$0xff]
        %v537 = vld [vmem:[%s3 + $0x88] sm:$0xff]
        %v538 = vld [vmem:[%s3 + $0x90] sm:$0xff]
        %v539 = vld [vmem:[%s3 + $0x98] sm:$0xff]
        %v540 = vld [vmem:[%s3 + $0xa0] sm:$0xff]
        %v541 = vld [vmem:[%s3 + $0xa8] sm:$0xff]
        %v542 = vld [vmem:[%s3 + $0xb0] sm:$0xff]
        %v543 = vld [vmem:[%s3 + $0xb8] sm:$0xff]
        %v544 = vld [vmem:[%s3 + $0xc0] sm:$0xff]
        %v545 = vld [vmem:[%s3 + $0xc8] sm:$0xff]
        %v546 = vld [vmem:[%s3 + $0xd0] sm:$0xff]
        %v547 = vld [vmem:[%s3 + $0xd8] sm:$0xff]
        %v548 = vld [vmem:[%s3 + $0xe0] sm:$0xff]
        %v549 = vld [vmem:[%s3 + $0xe8] sm:$0xff]
        %v550 = vld [vmem:[%s3 + $0xf0] sm:$0xff]
        %v551 = vld [vmem:[%s3 + $0xf8] sm:$0xff]
        %v552 = vld [vmem:[#allocation7] sm:$0x1]
        %v554 = vlaneseq
        %v555 = vshrl.u32 %v554, 7
        %v556 = vsub.s32 0, %v555
        %v557 = vrot.slane %v552, %v556
        %559 = vmatprep.subr.mxu0 0.0
        %560 = vmatpush1.msra.mxu0 %v520
        %561 = vmatprep.subr.mxu0 0.0
        %562 = vmatpush1.msra.mxu0 %v521
        %563 = vmatprep.subr.mxu0 0.0
        %564 = vmatpush1.msra.mxu0 %v522
        %565 = vmatprep.subr.mxu0 0.0
        %566 = vmatpush1.msra.mxu0 %v523
        %567 = vmatprep.subr.mxu0 0.0
        %568 = vmatpush1.msra.mxu0 %v524
        %569 = vmatprep.subr.mxu0 0.0
        %570 = vmatpush1.msra.mxu0 %v525
        %571 = vmatprep.subr.mxu0 0.0
        %572 = vmatpush1.msra.mxu0 %v526
        %573 = vmatprep.subr.mxu0 0.0
        %574 = vmatpush1.msra.mxu0 %v527
        %575 = vmatprep.subr.mxu0 0.0
        %576 = vmatpush1.msra.mxu0 %v528
        %577 = vmatprep.subr.mxu0 0.0
        %578 = vmatpush1.msra.mxu0 %v529
        %579 = vmatprep.subr.mxu0 0.0
        %580 = vmatpush1.msra.mxu0 %v530
        %581 = vmatprep.subr.mxu0 0.0
        %582 = vmatpush1.msra.mxu0 %v531
        %583 = vmatprep.subr.mxu0 0.0
        %584 = vmatpush1.msra.mxu0 %v532
        %585 = vmatprep.subr.mxu0 0.0
        %586 = vmatpush1.msra.mxu0 %v533
        %587 = vmatprep.subr.mxu0 0.0
        %588 = vmatpush1.msra.mxu0 %v534
        %589 = vmatprep.subr.mxu0 0.0
        %590 = vmatpush1.msra.mxu0 %v535
        %591 = vmatprep.subr.mxu0 0.0
        %592 = vmatpush1.msra.mxu0 %v536
        %593 = vmatprep.subr.mxu0 0.0
        %594 = vmatpush1.msra.mxu0 %v537
        %595 = vmatprep.subr.mxu0 0.0
        %596 = vmatpush1.msra.mxu0 %v538
        %597 = vmatprep.subr.mxu0 0.0
        %598 = vmatpush1.msra.mxu0 %v539
        %599 = vmatprep.subr.mxu0 0.0
        %600 = vmatpush1.msra.mxu0 %v540
        %601 = vmatprep.subr.mxu0 0.0
        %602 = vmatpush1.msra.mxu0 %v541
        %603 = vmatprep.subr.mxu0 0.0
        %604 = vmatpush1.msra.mxu0 %v542
        %605 = vmatprep.subr.mxu0 0.0
        %606 = vmatpush1.msra.mxu0 %v543
        %607 = vmatprep.subr.mxu0 0.0
        %608 = vmatpush1.msra.mxu0 %v544
        %609 = vmatprep.subr.mxu0 0.0
        %610 = vmatpush1.msra.mxu0 %v545
        %611 = vmatprep.subr.mxu0 0.0
        %612 = vmatpush1.msra.mxu0 %v546
        %613 = vmatprep.subr.mxu0 0.0
        %614 = vmatpush1.msra.mxu0 %v547
        %615 = vmatprep.subr.mxu0 0.0
        %616 = vmatpush1.msra.mxu0 %v548
        %617 = vmatprep.subr.mxu0 0.0
        %618 = vmatpush1.msra.mxu0 %v549
        %619 = vmatprep.subr.mxu0 0.0
        %620 = vmatpush1.msra.mxu0 %v550
        %621 = vmatprep.subr.mxu0 0.0
        %622 = vmatpush1.msra.mxu0 %v551
        %623 = vmatprep.mubr.f32.mxu0 %v519
        %624 = vmatmul.mubr.f32.gmra.mrb[0].mxu0 %v518
        %v625 = vpop.f32.mrb[0].mxu0
        %v626 = vadd.f32 %v557, %v625
        %v627 = vpop.f32.mrb[0].mxu0
        %628 = vdwg.mxu0
        %v629 = vmax.f32 %v626, 0.0
        %v630 = vld [vmem:[%s5] sm:$0xff]
        %v631 = vld [vmem:[%s5 + $0x8] sm:$0xff]
        %v632 = vld [vmem:[%s5 + $0x10] sm:$0xff]
        %v633 = vld [vmem:[%s5 + $0x18] sm:$0xff]
        %v634 = vld [vmem:[%s5 + $0x20] sm:$0xff]
        %v635 = vld [vmem:[%s5 + $0x28] sm:$0xff]
        %v636 = vld [vmem:[%s5 + $0x30] sm:$0xff]
        %v637 = vld [vmem:[%s5 + $0x38] sm:$0xff]
        %v638 = vld [vmem:[%s5 + $0x40] sm:$0xff]
        %v639 = vld [vmem:[%s5 + $0x48] sm:$0xff]
        %v640 = vld [vmem:[%s5 + $0x50] sm:$0xff]
        %v641 = vld [vmem:[%s5 + $0x58] sm:$0xff]
        %v642 = vld [vmem:[%s5 + $0x60] sm:$0xff]
        %v643 = vld [vmem:[%s5 + $0x68] sm:$0xff]
        %v644 = vld [vmem:[%s5 + $0x70] sm:$0xff]
        %v645 = vld [vmem:[%s5 + $0x78] sm:$0xff]
        %v646 = vld [vmem:[%s5 + $0x80] sm:$0xff]
        %v647 = vld [vmem:[%s5 + $0x88] sm:$0xff]
        %v648 = vld [vmem:[%s5 + $0x90] sm:$0xff]
        %v649 = vld [vmem:[%s5 + $0x98] sm:$0xff]
        %v650 = vld [vmem:[%s5 + $0xa0] sm:$0xff]
        %v651 = vld [vmem:[%s5 + $0xa8] sm:$0xff]
        %v652 = vld [vmem:[%s5 + $0xb0] sm:$0xff]
        %v653 = vld [vmem:[%s5 + $0xb8] sm:$0xff]
        %v654 = vld [vmem:[%s5 + $0xc0] sm:$0xff]
        %v655 = vld [vmem:[%s5 + $0xc8] sm:$0xff]
        %v656 = vld [vmem:[%s5 + $0xd0] sm:$0xff]
        %v657 = vld [vmem:[%s5 + $0xd8] sm:$0xff]
        %v658 = vld [vmem:[%s5 + $0xe0] sm:$0xff]
        %v659 = vld [vmem:[%s5 + $0xe8] sm:$0xff]
        %v660 = vld [vmem:[%s5 + $0xf0] sm:$0xff]
        %v661 = vld [vmem:[%s5 + $0xf8] sm:$0xff]
        %v662 = vld [vmem:[#allocation8] sm:$0x3]
        %v664 = vlaneseq
        %v665 = vshrl.u32 %v664, 7
        %v666 = vsub.s32 0, %v665
        %v667 = vrot.slane %v662, %v666
        %v668 = vlaneseq
        %v669 = vshrl.u32 %v668, 7
        %v670 = vsub.s32 1, %v669
        %v671 = vrot.slane %v662, %v670
        %674 = vmatprep.subr.mxu0 %v631
        %675 = vmatpush1.msra.mxu0 %v630
        %676 = vmatprep.subr.mxu0 %v633
        %677 = vmatpush1.msra.mxu0 %v632
        %678 = vmatprep.subr.mxu0 %v635
        %679 = vmatpush1.msra.mxu0 %v634
        %680 = vmatprep.subr.mxu0 %v637
        %681 = vmatpush1.msra.mxu0 %v636
        %682 = vmatprep.subr.mxu0 %v639
        %683 = vmatpush1.msra.mxu0 %v638
        %684 = vmatprep.subr.mxu0 %v641
        %685 = vmatpush1.msra.mxu0 %v640
        %686 = vmatprep.subr.mxu0 %v643
        %687 = vmatpush1.msra.mxu0 %v642
        %688 = vmatprep.subr.mxu0 %v645
        %689 = vmatpush1.msra.mxu0 %v644
        %690 = vmatprep.subr.mxu0 %v647
        %691 = vmatpush1.msra.mxu0 %v646
        %692 = vmatprep.subr.mxu0 %v649
        %693 = vmatpush1.msra.mxu0 %v648
        %694 = vmatprep.subr.mxu0 %v651
        %695 = vmatpush1.msra.mxu0 %v650
        %696 = vmatprep.subr.mxu0 %v653
        %697 = vmatpush1.msra.mxu0 %v652
        %698 = vmatprep.subr.mxu0 %v655
        %699 = vmatpush1.msra.mxu0 %v654
        %700 = vmatprep.subr.mxu0 %v657
        %701 = vmatpush1.msra.mxu0 %v656
        %702 = vmatprep.subr.mxu0 %v659
        %703 = vmatpush1.msra.mxu0 %v658
        %704 = vmatprep.subr.mxu0 %v661
        %705 = vmatpush1.msra.mxu0 %v660
        %706 = vmatprep.subr.mxu0 0.0
        %707 = vmatpush1.msra.mxu0 0.0
        %708 = vmatprep.subr.mxu0 0.0
        %709 = vmatpush1.msra.mxu0 0.0
        %710 = vmatprep.subr.mxu0 0.0
        %711 = vmatpush1.msra.mxu0 0.0
        %712 = vmatprep.subr.mxu0 0.0
        %713 = vmatpush1.msra.mxu0 0.0
        %714 = vmatprep.subr.mxu0 0.0
        %715 = vmatpush1.msra.mxu0 0.0
        %716 = vmatprep.subr.mxu0 0.0
        %717 = vmatpush1.msra.mxu0 0.0
        %718 = vmatprep.subr.mxu0 0.0
        %719 = vmatpush1.msra.mxu0 0.0
        %720 = vmatprep.subr.mxu0 0.0
        %721 = vmatpush1.msra.mxu0 0.0
        %722 = vmatprep.subr.mxu0 0.0
        %723 = vmatpush1.msra.mxu0 0.0
        %724 = vmatprep.subr.mxu0 0.0
        %725 = vmatpush1.msra.mxu0 0.0
        %726 = vmatprep.subr.mxu0 0.0
        %727 = vmatpush1.msra.mxu0 0.0
        %728 = vmatprep.subr.mxu0 0.0
        %729 = vmatpush1.msra.mxu0 0.0
        %730 = vmatprep.subr.mxu0 0.0
        %731 = vmatpush1.msra.mxu0 0.0
        %732 = vmatprep.subr.mxu0 0.0
        %733 = vmatpush1.msra.mxu0 0.0
        %734 = vmatprep.subr.mxu0 0.0
        %735 = vmatpush1.msra.mxu0 0.0
        %736 = vmatprep.subr.mxu0 0.0
        %737 = vmatpush1.msra.mxu0 0.0
        %738 = vmatprep.mubr.f32.mxu0 0.0
        %739 = vmatmul.mubr.f32.gmra.mrb[0].mxu0 %v629
        %v740 = vpop.f32.mrb[0].mxu0
        %v741 = vadd.f32 %v667, %v740
        %v742 = vpop.f32.mrb[0].mxu0
        %v743 = vadd.f32 %v671, %v742
        %744 = vdwg.mxu0
        %v745 = vmax.f32 %v741, 0.0
        %v746 = vmax.f32 %v743, 0.0
        %v747 = vld [vmem:[%s7] sm:$0xff]
        %v748 = vld [vmem:[%s7 + $0x8] sm:$0xff]
        %v749 = vld [vmem:[%s7 + $0x10] sm:$0xff]
        %v750 = vld [vmem:[%s7 + $0x18] sm:$0xff]
        %v751 = vld [vmem:[%s7 + $0x20] sm:$0xff]
        %v752 = vld [vmem:[%s7 + $0x28] sm:$0xff]
        %v753 = vld [vmem:[%s7 + $0x30] sm:$0xff]
        %v754 = vld [vmem:[%s7 + $0x38] sm:$0xff]
        %v755 = vld [vmem:[%s7 + $0x40] sm:$0xff]
        %v756 = vld [vmem:[%s7 + $0x48] sm:$0xff]
        %v757 = vld [vmem:[%s7 + $0x50] sm:$0xff]
        %v758 = vld [vmem:[%s7 + $0x58] sm:$0xff]
        %v759 = vld [vmem:[%s7 + $0x60] sm:$0xff]
        %v760 = vld [vmem:[%s7 + $0x68] sm:$0xff]
        %v761 = vld [vmem:[%s7 + $0x70] sm:$0xff]
        %v762 = vld [vmem:[%s7 + $0x78] sm:$0xff]
        %v763 = vld [vmem:[%s7 + $0x80] sm:$0xff]
        %v764 = vld [vmem:[%s7 + $0x88] sm:$0xff]
        %v765 = vld [vmem:[%s7 + $0x90] sm:$0xff]
        %v766 = vld [vmem:[%s7 + $0x98] sm:$0xff]
        %v767 = vld [vmem:[%s7 + $0xa0] sm:$0xff]
        %v768 = vld [vmem:[%s7 + $0xa8] sm:$0xff]
        %v769 = vld [vmem:[%s7 + $0xb0] sm:$0xff]
        %v770 = vld [vmem:[%s7 + $0xb8] sm:$0xff]
        %v771 = vld [vmem:[%s7 + $0xc0] sm:$0xff]
        %v772 = vld [vmem:[%s7 + $0xc8] sm:$0xff]
        %v773 = vld [vmem:[%s7 + $0xd0] sm:$0xff]
        %v774 = vld [vmem:[%s7 + $0xd8] sm:$0xff]
        %v775 = vld [vmem:[%s7 + $0xe0] sm:$0xff]
        %v776 = vld [vmem:[%s7 + $0xe8] sm:$0xff]
        %v777 = vld [vmem:[%s7 + $0xf0] sm:$0xff]
        %v778 = vld [vmem:[%s7 + $0xf8] sm:$0xff]
        %v779 = vld [vmem:[#allocation10] sm:$0x1]
        %v781 = vlaneseq
        %v782 = vshrl.u32 %v781, 7
        %v783 = vsub.s32 0, %v782
        %v784 = vrot.slane %v779, %v783
        %786 = vmatprep.subr.mxu0 0.0
        %787 = vmatpush1.msra.mxu0 %v747
        %788 = vmatprep.subr.mxu0 0.0
        %789 = vmatpush1.msra.mxu0 %v748
        %790 = vmatprep.subr.mxu0 0.0
        %791 = vmatpush1.msra.mxu0 %v749
        %792 = vmatprep.subr.mxu0 0.0
        %793 = vmatpush1.msra.mxu0 %v750
        %794 = vmatprep.subr.mxu0 0.0
        %795 = vmatpush1.msra.mxu0 %v751
        %796 = vmatprep.subr.mxu0 0.0
        %797 = vmatpush1.msra.mxu0 %v752
        %798 = vmatprep.subr.mxu0 0.0
        %799 = vmatpush1.msra.mxu0 %v753
        %800 = vmatprep.subr.mxu0 0.0
        %801 = vmatpush1.msra.mxu0 %v754
        %802 = vmatprep.subr.mxu0 0.0
        %803 = vmatpush1.msra.mxu0 %v755
        %804 = vmatprep.subr.mxu0 0.0
        %805 = vmatpush1.msra.mxu0 %v756
        %806 = vmatprep.subr.mxu0 0.0
        %807 = vmatpush1.msra.mxu0 %v757
        %808 = vmatprep.subr.mxu0 0.0
        %809 = vmatpush1.msra.mxu0 %v758
        %810 = vmatprep.subr.mxu0 0.0
        %811 = vmatpush1.msra.mxu0 %v759
        %812 = vmatprep.subr.mxu0 0.0
        %813 = vmatpush1.msra.mxu0 %v760
        %814 = vmatprep.subr.mxu0 0.0
        %815 = vmatpush1.msra.mxu0 %v761
        %816 = vmatprep.subr.mxu0 0.0
        %817 = vmatpush1.msra.mxu0 %v762
        %818 = vmatprep.subr.mxu0 0.0
        %819 = vmatpush1.msra.mxu0 %v763
        %820 = vmatprep.subr.mxu0 0.0
        %821 = vmatpush1.msra.mxu0 %v764
        %822 = vmatprep.subr.mxu0 0.0
        %823 = vmatpush1.msra.mxu0 %v765
        %824 = vmatprep.subr.mxu0 0.0
        %825 = vmatpush1.msra.mxu0 %v766
        %826 = vmatprep.subr.mxu0 0.0
        %827 = vmatpush1.msra.mxu0 %v767
        %828 = vmatprep.subr.mxu0 0.0
        %829 = vmatpush1.msra.mxu0 %v768
        %830 = vmatprep.subr.mxu0 0.0
        %831 = vmatpush1.msra.mxu0 %v769
        %832 = vmatprep.subr.mxu0 0.0
        %833 = vmatpush1.msra.mxu0 %v770
        %834 = vmatprep.subr.mxu0 0.0
        %835 = vmatpush1.msra.mxu0 %v771
        %836 = vmatprep.subr.mxu0 0.0
        %837 = vmatpush1.msra.mxu0 %v772
        %838 = vmatprep.subr.mxu0 0.0
        %839 = vmatpush1.msra.mxu0 %v773
        %840 = vmatprep.subr.mxu0 0.0
        %841 = vmatpush1.msra.mxu0 %v774
        %842 = vmatprep.subr.mxu0 0.0
        %843 = vmatpush1.msra.mxu0 %v775
        %844 = vmatprep.subr.mxu0 0.0
        %845 = vmatpush1.msra.mxu0 %v776
        %846 = vmatprep.subr.mxu0 0.0
        %847 = vmatpush1.msra.mxu0 %v777
        %848 = vmatprep.subr.mxu0 0.0
        %849 = vmatpush1.msra.mxu0 %v778
        %850 = vmatprep.mubr.f32.mxu0 %v746
        %851 = vmatmul.mubr.f32.gmra.mrb[0].mxu0 %v745
        %v852 = vpop.f32.mrb[0].mxu0
        %v853 = vadd.f32 %v784, %v852
        %v854 = vpop.f32.mrb[0].mxu0
        %855 = vdwg.mxu0
        %856 = vst.msk [vmem:[%s399] sm:$0xff] %vm443, %v853
        %s857 = sand.u32 %s230, 1
        %s858 = scalar_lea.sflag [#allocation4], %s857
        %s859 = sand.u32 %s230, 1
        %s860 = smul.addr %s859, 8
        %s861 = scalar_lea.vmem [#allocation11], %s860
        // Predicated region
        $region77: #{dae_forward.1} parent=55 // pred_check
          %p862 = pneg %p240
        $region78: #{dae_forward.1} parent=55 // pred_check_branch
          %864 = sbr.rel (%p862) target = $region80
        $region79: #{dae_forward.1} parent=55 // pred_region
          %s866 = ssub.s32 128, 128
          %867 = vsyncadd %s858, %s866
          %s868 = smul.addr %s28, 128
          %s869 = scalar_lea.hbm %s9, %s868
          %s871 = sshll.u32 %s861, 4
          %s872 = int_to_ptr.vmem [resolvable:$true] %s871
          %874 = dma.vmem_to_hbm [thread:$0]  %s872, 128, %s869, %s858
        $region80: #{dae_forward.1} parent=55 // pred_fallthru
          _
      $region56: #{dae_forward.1} parent=5 // pred_fallthru
        _
      %p875 = scmp.le.s32.totalorder 2, %s23
      // Predicated region
      $region81: #{dae_forward.1} parent=5 // pred_check
        %p876 = pneg %p875
      $region82: #{dae_forward.1} parent=5 // pred_check_branch
        %878 = sbr.rel (%p876) target = $region84
      $region83: #{dae_forward.1} parent=5 // pred_region
        %s879 = ssub.s32 %s23, 2
        // Predicated region
        $region85: #{dae_forward.1} parent=83 // pred_check
          %p880 = pneg %p246
        $region86: #{dae_forward.1} parent=83 // pred_check_branch
          %882 = sbr.rel (%p880) target = $region88
        $region87: #{dae_forward.1} parent=83 // pred_region
          %s883 = sand.u32 %s231, 1
          %s884 = scalar_lea.sflag [#allocation4], %s883
          %s885 = sand.u32 %s231, 1
          %s886 = smul.addr %s885, 8
          %s887 = scalar_lea.vmem [#allocation11], %s886
          %888 = dma.done %s884, 128
        $region88: #{dae_forward.1} parent=83 // pred_fallthru
          _
      $region84: #{dae_forward.1} parent=5 // pred_fallthru
        _
    $region6: #{dae_forward.1} parent=1 // loop_footer
      %s27 = sadd.s32 1, %s23
    $region7: #{dae_forward.1} parent=1 // loop_footer_branch
      %22 = sbr.rel target = $region3
    $region8: #{dae_forward.1} parent=1 // loop_exit
      _
    %889 = vsyncpa [#allocation3], 1
    %s890 = scalar_lea.sflag [#allocation3], 1
    %891 = vsyncpa %s890, 1
    %892 = vsyncpa [#allocation6], 1
    %893 = vsyncpa [#allocation9], 1
    %894 = vsyncpa [#allocation4], 1
    %s895 = scalar_lea.sflag [#allocation4], 1
    %896 = vsyncpa %s895, 1

</llo_original>
